<compile_context>
chip_gen: v5e
topology: v5e:2x2
jax: 0.10.0
libtpu: 0.0.40
codegen_flags: <defaults>
</compile_context>

<pallas_src>
import functools

import numpy as np
import jax
import jax.numpy as jnp
from jax.experimental import pallas as pl
from jax.experimental.pallas import tpu as pltpu

EPS = 1e-12

# Small shapes consistent with a (batch, freq_bins, frames, real/imag) STFT.
B, F, T = 2, 33, 8          # n_fft=64 -> F = 33 onesided bins
LANES = 128
SUBLANES = 8


# ----- Pallas kernel ----------------------------------------------------------
def _loss_mse_kernel(x_ref, out_ref, *, w_ri, w_mag):
    # x_ref: (4, rows, 128) f32 in VMEM, planes stacked as [pr, pi, cr, ci].
    pr = x_ref[0]
    pi = x_ref[1]
    cr = x_ref[2]
    ci = x_ref[3]

    # Log-domain: s = re^2 + im^2 + eps (> 0), so
    #   1/mag**0.7 = exp(-0.35 * log(s)),   mag**0.3 = exp(0.15 * log(s)).
    p_log = jnp.log(pr * pr + pi * pi + EPS)
    c_log = jnp.log(cr * cr + ci * ci + EPS)

    inv_p07 = jnp.exp(-0.35 * p_log)
    inv_c07 = jnp.exp(-0.35 * c_log)
    p_mag03 = jnp.exp(0.15 * p_log)
    c_mag03 = jnp.exp(0.15 * c_log)

    dr = pr * inv_p07 - cr * inv_c07      # compressed real difference
    di = pi * inv_p07 - ci * inv_c07      # compressed imag difference
    dm = p_mag03 - c_mag03                # compressed magnitude difference

    # (30/N)*sum(dr^2 + di^2) + (70/N)*sum(dm^2); weights carry the 1/N.
    acc = w_ri * (dr * dr + di * di) + w_mag * (dm * dm)

    out_ref[0, 0] = jnp.sum(acc)


# ----- wrapper ---------------------------------------------------------------
@jax.jit
def loss_mse(pred_stft, clean_stft):
    b, f, t, _ = pred_stft.shape
    n = b * f * t
    rows = pl.cdiv(pl.cdiv(n, LANES), SUBLANES) * SUBLANES   # lane-dense, mult of 8
    pad_n = rows * LANES

    # Stack the four planes into one operand: (4, b, f, t) -> (4, rows, 128).
    planes = jnp.stack(
        [pred_stft[..., 0], pred_stft[..., 1],
         clean_stft[..., 0], clean_stft[..., 1]], axis=0)
    flat = planes.reshape(4, -1).astype(jnp.float32)
    flat = jnp.pad(flat, ((0, 0), (0, pad_n - n)))
    x = flat.reshape(4, rows, LANES)

    out = pl.pallas_call(
        functools.partial(_loss_mse_kernel,
                          w_ri=30.0 / float(n), w_mag=70.0 / float(n)),
        out_shape=jax.ShapeDtypeStruct((1, 1), jnp.float32),
        in_specs=[pl.BlockSpec(memory_space=pltpu.MemorySpace.VMEM)],
        out_specs=pl.BlockSpec(memory_space=pltpu.MemorySpace.SMEM),
    )(x)
    return out[0, 0]


# ----- pure-JAX reference (mirrors the PyTorch module exactly) ----------------
def _loss_mse_ref(pred_stft, clean_stft):
    pr, pi = pred_stft[..., 0], pred_stft[..., 1]
    cr, ci = clean_stft[..., 0], clean_stft[..., 1]
    p_mag = jnp.sqrt(pr ** 2 + pi ** 2 + EPS)
    c_mag = jnp.sqrt(cr ** 2 + ci ** 2 + EPS)
    pr_c = pr / p_mag ** 0.7
    pi_c = pi / p_mag ** 0.7
    cr_c = cr / c_mag ** 0.7
    ci_c = ci / c_mag ** 0.7
    loss_real = 30.0 * jnp.mean((pr_c - cr_c) ** 2)
    loss_imag = 30.0 * jnp.mean((pi_c - ci_c) ** 2)
    loss_mag = 70.0 * jnp.mean((p_mag ** 0.3 - c_mag ** 0.3) ** 2)
    return loss_real + loss_imag + loss_mag


if __name__ == "__main__":
    key = jax.random.PRNGKey(0)
    k1, k2 = jax.random.split(key)
    pred_stft = jax.random.normal(k1, (B, F, T, 2), dtype=jnp.float32)
    clean_stft = jax.random.normal(k2, (B, F, T, 2), dtype=jnp.float32)

    out = loss_mse(pred_stft, clean_stft)
    out = jax.block_until_ready(out)

    ref = jax.block_until_ready(_loss_mse_ref(pred_stft, clean_stft))
    np.testing.assert_allclose(np.asarray(out), np.asarray(ref), rtol=2e-3, atol=1e-3)

    print("KERNEL_OK")
</pallas_src>

<mosaic_0001>
module attributes {stable_mosaic.version = 11 : i64} {
  func.func @_loss_mse_kernel(%arg0: memref<4x8x128xf32, #tpu.memory_space<vmem>>, %arg1: memref<1x1xf32, #tpu.memory_space<smem>>) attributes {dimension_semantics = [], scalar_prefetch = 0 : i64, scratch_operands = 0 : i64, tpu.core_type = #tpu.core_type<tc>} {
    %c0 = arith.constant 0 : index
    %c0_0 = arith.constant 0 : index
    %c0_1 = arith.constant 0 : index
    %0 = vector.load %arg0[%c0, %c0_0, %c0_1] : memref<4x8x128xf32, #tpu.memory_space<vmem>>, vector<1x8x128xf32>
    %1 = vector.shape_cast %0 : vector<1x8x128xf32> to vector<8x128xf32>
    %c1 = arith.constant 1 : index
    %c0_2 = arith.constant 0 : index
    %c0_3 = arith.constant 0 : index
    %2 = vector.load %arg0[%c1, %c0_2, %c0_3] : memref<4x8x128xf32, #tpu.memory_space<vmem>>, vector<1x8x128xf32>
    %3 = vector.shape_cast %2 : vector<1x8x128xf32> to vector<8x128xf32>
    %c2 = arith.constant 2 : index
    %c0_4 = arith.constant 0 : index
    %c0_5 = arith.constant 0 : index
    %4 = vector.load %arg0[%c2, %c0_4, %c0_5] : memref<4x8x128xf32, #tpu.memory_space<vmem>>, vector<1x8x128xf32>
    %5 = vector.shape_cast %4 : vector<1x8x128xf32> to vector<8x128xf32>
    %c3 = arith.constant 3 : index
    %c0_6 = arith.constant 0 : index
    %c0_7 = arith.constant 0 : index
    %6 = vector.load %arg0[%c3, %c0_6, %c0_7] : memref<4x8x128xf32, #tpu.memory_space<vmem>>, vector<1x8x128xf32>
    %7 = vector.shape_cast %6 : vector<1x8x128xf32> to vector<8x128xf32>
    %8 = arith.mulf %1, %1 : vector<8x128xf32>
    %9 = arith.mulf %3, %3 : vector<8x128xf32>
    %10 = arith.addf %8, %9 : vector<8x128xf32>
    %cst = arith.constant 9.99999996E-13 : f32
    %11 = vector.broadcast %cst : f32 to vector<8x128xf32>
    %12 = arith.addf %10, %11 : vector<8x128xf32>
    %13 = math.log %12 : vector<8x128xf32>
    %14 = arith.mulf %5, %5 : vector<8x128xf32>
    %15 = arith.mulf %7, %7 : vector<8x128xf32>
    %16 = arith.addf %14, %15 : vector<8x128xf32>
    %cst_8 = arith.constant 9.99999996E-13 : f32
    %17 = vector.broadcast %cst_8 : f32 to vector<8x128xf32>
    %18 = arith.addf %16, %17 : vector<8x128xf32>
    %19 = math.log %18 : vector<8x128xf32>
    %cst_9 = arith.constant -3.500000e-01 : f32
    %20 = vector.broadcast %cst_9 : f32 to vector<8x128xf32>
    %21 = arith.mulf %20, %13 : vector<8x128xf32>
    %22 = math.exp %21 : vector<8x128xf32>
    %cst_10 = arith.constant -3.500000e-01 : f32
    %23 = vector.broadcast %cst_10 : f32 to vector<8x128xf32>
    %24 = arith.mulf %23, %19 : vector<8x128xf32>
    %25 = math.exp %24 : vector<8x128xf32>
    %cst_11 = arith.constant 1.500000e-01 : f32
    %26 = vector.broadcast %cst_11 : f32 to vector<8x128xf32>
    %27 = arith.mulf %26, %13 : vector<8x128xf32>
    %28 = math.exp %27 : vector<8x128xf32>
    %cst_12 = arith.constant 1.500000e-01 : f32
    %29 = vector.broadcast %cst_12 : f32 to vector<8x128xf32>
    %30 = arith.mulf %29, %19 : vector<8x128xf32>
    %31 = math.exp %30 : vector<8x128xf32>
    %32 = arith.mulf %1, %22 : vector<8x128xf32>
    %33 = arith.mulf %5, %25 : vector<8x128xf32>
    %34 = arith.subf %32, %33 : vector<8x128xf32>
    %35 = arith.mulf %3, %22 : vector<8x128xf32>
    %36 = arith.mulf %7, %25 : vector<8x128xf32>
    %37 = arith.subf %35, %36 : vector<8x128xf32>
    %38 = arith.subf %28, %31 : vector<8x128xf32>
    %39 = arith.mulf %34, %34 : vector<8x128xf32>
    %40 = arith.mulf %37, %37 : vector<8x128xf32>
    %41 = arith.addf %39, %40 : vector<8x128xf32>
    %cst_13 = arith.constant 0.0568181835 : f32
    %42 = vector.broadcast %cst_13 : f32 to vector<8x128xf32>
    %43 = arith.mulf %42, %41 : vector<8x128xf32>
    %44 = arith.mulf %38, %38 : vector<8x128xf32>
    %cst_14 = arith.constant 0.13257575 : f32
    %45 = vector.broadcast %cst_14 : f32 to vector<8x128xf32>
    %46 = arith.mulf %45, %44 : vector<8x128xf32>
    %47 = arith.addf %43, %46 : vector<8x128xf32>
    %48 = vector.shape_cast %47 : vector<8x128xf32> to vector<1x8x128xf32>
    %cst_15 = arith.constant dense<0.000000e+00> : vector<1xf32>
    %49 = vector.multi_reduction <add>, %48, %cst_15 [1, 2] : vector<1x8x128xf32> to vector<1xf32>
    %50 = vector.shape_cast %49 : vector<1xf32> to vector<1x1x1xf32>
    %51 = vector.extract %50[0, 0, 0] : f32 from vector<1x1x1xf32>
    %c0_16 = arith.constant 0 : index
    %c0_17 = arith.constant 0 : index
    %52 = memref.load %arg1[%c0_16, %c0_17] : memref<1x1xf32, #tpu.memory_space<smem>>
    memref.store %51, %arg1[%c0_16, %c0_17] : memref<1x1xf32, #tpu.memory_space<smem>>
    return
  }
}

</mosaic_0001>

<llo_original>
// kernel: loss_mse.1
$region0: #{loss_mse.1}
  #allocation0 [shape = 'u32[]', space=smem, size = 0x4, offset = 0x4, fixed_abs, tag = 'smem constant byte address 0x4 - core index']
  #allocation1 [shape = 'u32[72,128]{1,0:T(1,128)}', space=vmem, size = 0x9000, scoped, tag = 'internal scratch']
  %s0 = inlined_call_operand.vmem [shape: f32[4,8,128], index: 0, kind: input, shape index: {}]
  %s1 = inlined_call_operand.hbm [shape: f32[1,1], index: 1, kind: output, shape index: {}]
  %s2 = sld [smem:[#allocation0]]
  $region14: #{loss_mse.1} parent=0
    _
  %s4 = ssub.s32 1, %s2
  %s5 = scalar_select 0, %s4, %s2
  $region1: #{loss_mse.1} parent=0
    #allocation2 [shape = 'u8[512]{0}', space=smem, size = 0x200, scoped, tag = 'output window, operand 0, single buffered']
    #allocation3 [shape = 's32[1]{0}', space=sflag, size = 0x4, scoped, tag = 'scoped memory for loss_mse.1']
    %6 = vsyncpa [#allocation3], 0
    // Predicated region
    $region2: #{loss_mse.1} parent=1 // pred_check
      _
    $region3: #{loss_mse.1} parent=1 // pred_check_branch
      %8 = sbr.rel (0) target = $region5
    $region4: #{loss_mse.1} parent=1 // pred_region
      _
    $region5: #{loss_mse.1} parent=1 // pred_fallthru
      _
    %v9 = vld [vmem:[%s0] sm:$0xff]
    %s10 = scalar_lea.vmem %s0, 8
    %v11 = vld [vmem:[%s10] sm:$0xff]
    %s12 = scalar_lea.vmem %s0, 16
    %v13 = vld [vmem:[%s12] sm:$0xff]
    %s14 = scalar_lea.vmem %s0, 24
    %v15 = vld [vmem:[%s14] sm:$0xff]
    %v16 = vmul.f32 %v9, %v9
    %v17 = vmul.f32 %v11, %v11
    %v18 = vadd.f32 %v16, %v17
    %v19 = vadd.f32 %v18, 1e-12
    %v20 = vlog2.pop %v19
    %v21 = vmul.f32 %v20, 0.6931472
    %v22 = vmul.f32 %v13, %v13
    %v23 = vmul.f32 %v15, %v15
    %v24 = vadd.f32 %v22, %v23
    %v25 = vadd.f32 %v24, 1e-12
    %v26 = vlog2.pop %v25
    %v27 = vmul.f32 %v26, 0.6931472
    %v28 = vmul.f32 %v21, -0.35
    %v29 = vmul.f32 %v28, 1.442695
    %v30 = vpow.pop %v29
    %v31 = vmul.f32 %v27, -0.35
    %v32 = vmul.f32 %v31, 1.442695
    %v33 = vpow.pop %v32
    %v34 = vmul.f32 %v21, 0.15
    %v35 = vmul.f32 %v34, 1.442695
    %v36 = vpow.pop %v35
    %v37 = vmul.f32 %v27, 0.15
    %v38 = vmul.f32 %v37, 1.442695
    %v39 = vpow.pop %v38
    %v40 = vmul.f32 %v9, %v30
    %v41 = vmul.f32 %v13, %v33
    %v42 = vsub.f32 %v40, %v41
    %v43 = vmul.f32 %v11, %v30
    %v44 = vmul.f32 %v15, %v33
    %v45 = vsub.f32 %v43, %v44
    %v46 = vsub.f32 %v36, %v39
    %v47 = vmul.f32 %v42, %v42
    %v48 = vmul.f32 %v45, %v45
    %v49 = vadd.f32 %v47, %v48
    %v50 = vmul.f32 %v49, 0.056818184
    %v51 = vmul.f32 %v46, %v46
    %v52 = vmul.f32 %v51, 0.13257575
    %v53 = vadd.f32 %v50, %v52
    %54 = vadd.xlane.f32.xlu0 %v53
    %v55 = vpop.xlane.xlu0 %54
    %v56 = vrot.slane %v55, 4
    %v57 = vadd.f32 %v55, %v56
    %v58 = vrot.slane %v57, 2
    %v59 = vadd.f32 %v57, %v58
    %v60 = vrot.slane %v59, 1
    %v61 = vadd.f32 %v59, %v60
    %s62 = vtos %v61
    %s63 = scalar_lea.smem [#allocation2], 0
    %64 = sst [smem:[%s63]] %s62
    // Predicated region
    $region6: #{loss_mse.1} parent=1 // pred_check
      _
    $region7: #{loss_mse.1} parent=1 // pred_check_branch
      %66 = sbr.rel (0) target = $region9
    $region8: #{loss_mse.1} parent=1 // pred_region
      %68 = vsyncadd [#allocation3], 0
      %s70 = sshll.u32 %s1, 4
      %s71 = int_to_ptr.hbm [resolvable:$true] %s70
      %73 = dma.smem_to_hbm [#allocation2], 16, %s71, [#allocation3]
    $region9: #{loss_mse.1} parent=1 // pred_fallthru
      _
    // Predicated region
    $region10: #{loss_mse.1} parent=1 // pred_check
      _
    $region11: #{loss_mse.1} parent=1 // pred_check_branch
      %75 = sbr.rel (0) target = $region13
    $region12: #{loss_mse.1} parent=1 // pred_region
      %77 = dma.done [#allocation3], 16
    $region13: #{loss_mse.1} parent=1 // pred_fallthru
      _
    %78 = sfence
    %79 = vsyncpa [#allocation3], 1

</llo_original>
